<compile_context>
chip_gen: v5e
topology: v5e:2x2
jax: 0.10.0
libtpu: 0.0.40
codegen_flags: <defaults>
</compile_context>

<pallas_src>
import functools

import jax
import jax.numpy as jnp
from jax.experimental import pallas as pl
from jax.experimental.pallas import tpu as pltpu

F32 = jnp.float32


# --------------------------------------------------------------------------- #
# Fused MMILB kernel (batch-in-lanes layout)
# --------------------------------------------------------------------------- #
def _mmilb_kernel(inv_b, mid_act, batch, block_b,
                  xt_ref, yt_ref,          # (x_size, block_b), (y_size, block_b)
                  w1_ref, b1_ref,          # (2y, x_size), (2y, 1)  fused layer 1
                  w2_ref, b2_ref,          # (2y, 2y),     (2y, 1)  block-diag layer 2
                  lld_ref,                 # (1, 1) SMEM scalar output
                  acc_ref):                # (y_size, block_b) VMEM accumulator
    i = pl.program_id(0)

    @pl.when(i == 0)
    def _init():
        lld_ref[0, 0] = jnp.float32(0.0)
        acc_ref[...] = jnp.zeros_like(acc_ref)

    def mid(h):
        if mid_act == "relu":
            return jnp.maximum(h, 0.0)
        if mid_act == "tanh":
            return jnp.tanh(h)
        return h

    xt = xt_ref[...]                                           # (x_size, block_b)

    # Fused layer 1 for mu|logvar: (2y, x) @ (x, b) + (2y, 1)
    h = mid(jnp.dot(w1_ref[...], xt, preferred_element_type=F32) + b1_ref[...])
    # Fused (block-diagonal) layer 2: rows 0:y -> mu, rows y:2y -> logvar
    out = jnp.dot(w2_ref[...], h, preferred_element_type=F32) + b2_ref[...]

    y_size = yt_ref.shape[0]
    mu = out[:y_size, :]
    logvar = out[y_size:, :]

    # positive = -(mu - y)^2 / 2 / exp(logvar)  ==  -0.5 * diff^2 * exp(-logvar)
    diff = mu - yt_ref[...]
    positive = (-0.5) * diff * diff * jnp.exp(-logvar)

    # Mask out-of-range batch columns of the (possibly partial) last tile.
    if batch % block_b != 0:
        col = jax.lax.broadcasted_iota(jnp.int32, positive.shape, 1)
        valid = (i * block_b + col) < batch
        positive = jnp.where(valid, positive, 0.0)

    # Cheap per-step VPU accumulate; expensive reduce paid once at the end.
    acc_ref[...] += positive

    @pl.when(i == pl.num_programs(0) - 1)
    def _finalize():
        lld_ref[0, 0] = jnp.sum(acc_ref[...]) * inv_b


def mmilb(x, y, params, *, mid_activation="relu", block_b=None):
    """lld = mean_b sum_f [ -(mu-y)^2 / 2 / exp(logvar) ] via one pallas_call.

    x: (B, x_size), y: (B, y_size).  If block_b is given it should be a
    multiple of 128 (or >= B); default picks a single tile for B <= 2048.
    """
    B, x_size = x.shape
    y_size = y.shape[1]

    if block_b is None:
        block_b = B if B <= 2048 else 2048
    block_b = min(block_b, B)
    grid_n = pl.cdiv(B, block_b)

    # Lane-dense layout: batch on the last (lane) axis.
    xt = x.T                                                    # (x_size, B)
    yt = y.T                                                    # (y_size, B)

    # Fuse the mu / logvar chains: layer-1 stacked on the output dim, layer-2
    # block-diagonal, both stored as (out, in) for left-multiplication.
    w1 = jnp.concatenate([params["w_mu1"].T, params["w_lv1"].T], axis=0)  # (2y, x)
    b1 = jnp.concatenate([params["b_mu1"], params["b_lv1"]], axis=1).T    # (2y, 1)
    zeros = jnp.zeros((y_size, y_size), F32)
    w2 = jnp.concatenate(
        [jnp.concatenate([params["w_mu2"].T, zeros], axis=1),
         jnp.concatenate([zeros, params["w_lv2"].T], axis=1)], axis=0)    # (2y, 2y)
    b2 = jnp.concatenate([params["b_mu2"], params["b_lv2"]], axis=1).T    # (2y, 1)

    def const(shape):
        # Weights/biases: constant index_map -> resident in VMEM across steps.
        return pl.BlockSpec(shape, lambda i: (0, 0))

    grid_spec = pltpu.PrefetchScalarGridSpec(
        num_scalar_prefetch=0,
        grid=(grid_n,),
        in_specs=[
            pl.BlockSpec((x_size, block_b), lambda i: (0, i)),   # x^T tile
            pl.BlockSpec((y_size, block_b), lambda i: (0, i)),   # y^T tile
            const((2 * y_size, x_size)), const((2 * y_size, 1)),       # fused layer 1
            const((2 * y_size, 2 * y_size)), const((2 * y_size, 1)),   # fused layer 2
        ],
        out_specs=pl.BlockSpec(memory_space=pltpu.MemorySpace.SMEM),    # scalar lld
        scratch_shapes=[pltpu.VMEM((y_size, block_b), F32)],            # accumulator
    )

    out = pl.pallas_call(
        functools.partial(_mmilb_kernel, 1.0 / B, mid_activation, B, block_b),
        out_shape=jax.ShapeDtypeStruct((1, 1), F32),
        grid_spec=grid_spec,
        compiler_params=pltpu.CompilerParams(
            dimension_semantics=("arbitrary",)),   # scratch accumulates over grid
    )(xt, yt, w1, b1, w2, b2)
    return out[0, 0]


# --------------------------------------------------------------------------- #
# Pure-JAX reference (mirrors the PyTorch forward exactly) and parameter init
# --------------------------------------------------------------------------- #
def mmilb_ref(x, y, p):
    h_mu = jnp.maximum(x @ p["w_mu1"] + p["b_mu1"], 0.0)
    mu = h_mu @ p["w_mu2"] + p["b_mu2"]
    h_lv = jnp.maximum(x @ p["w_lv1"] + p["b_lv1"], 0.0)
    logvar = h_lv @ p["w_lv2"] + p["b_lv2"]
    positive = -(mu - y) ** 2 / 2.0 / jnp.exp(logvar)
    return jnp.mean(jnp.sum(positive, axis=-1))


def _init_linear(key, d_in, d_out, scale=0.1):
    kw, kb = jax.random.split(key)
    return (jax.random.normal(kw, (d_in, d_out), F32) * scale,
            jax.random.normal(kb, (1, d_out), F32) * scale)


def init_mmilb_params(key, x_size, y_size):
    k = jax.random.split(key, 4)
    wm1, bm1 = _init_linear(k[0], x_size, y_size)
    wm2, bm2 = _init_linear(k[1], y_size, y_size)
    wl1, bl1 = _init_linear(k[2], x_size, y_size)
    wl2, bl2 = _init_linear(k[3], y_size, y_size)
    # TODO(synk): entropy_prj (Linear(y_size, y_size//4) + Tanh) exists in
    # MMILB.__init__ but is never used in MMILB.forward, so it is not lowered.
    return {"w_mu1": wm1, "b_mu1": bm1, "w_mu2": wm2, "b_mu2": bm2,
            "w_lv1": wl1, "b_lv1": bl1, "w_lv2": wl2, "b_lv2": bl2}


# --------------------------------------------------------------------------- #
if __name__ == "__main__":
    key = jax.random.PRNGKey(0)
    x_size, y_size = 32, 16
    kp, kx, ky, kx2, ky2, kx3, ky3 = jax.random.split(key, 7)
    params = init_mmilb_params(kp, x_size, y_size)

    # Small batch: single full tile (batch on the lane axis).
    B = 8
    x = jax.random.normal(kx, (B, x_size), F32)
    y = jax.random.normal(ky, (B, y_size), F32)
    lld = mmilb(x, y, params)
    jax.block_until_ready(lld)
    ref = mmilb_ref(x, y, params)
    assert jnp.isfinite(lld)
    assert jnp.allclose(lld, ref, rtol=1e-3, atol=1e-3), (float(lld), float(ref))

    # Medium batch: still one tile (B <= 2048), fully lane-packed.
    B2 = 256
    x2 = jax.random.normal(kx2, (B2, x_size), F32)
    y2 = jax.random.normal(ky2, (B2, y_size), F32)
    lld2 = mmilb(x2, y2, params)
    jax.block_until_ready(lld2)
    ref2 = mmilb_ref(x2, y2, params)
    assert jnp.isfinite(lld2)
    assert jnp.allclose(lld2, ref2, rtol=1e-3, atol=1e-3), (float(lld2), float(ref2))

    # Non-divisible batch with an explicit small tile: exercises the cdiv grid,
    # the VMEM accumulator across steps, and the remainder-column masking.
    B3 = 300
    x3 = jax.random.normal(kx3, (B3, x_size), F32)
    y3 = jax.random.normal(ky3, (B3, y_size), F32)
    lld3 = mmilb(x3, y3, params, block_b=128)
    jax.block_until_ready(lld3)
    ref3 = mmilb_ref(x3, y3, params)
    assert jnp.isfinite(lld3)
    assert jnp.allclose(lld3, ref3, rtol=1e-3, atol=1e-3), (float(lld3), float(ref3))

    print("KERNEL_OK")
</pallas_src>

<mosaic_0001>
module attributes {stable_mosaic.version = 11 : i64} {
  func.func @_mmilb_kernel(%arg0: i32, %arg1: memref<32x8xf32, #tpu.memory_space<vmem>>, %arg2: memref<16x8xf32, #tpu.memory_space<vmem>>, %arg3: memref<32x32xf32, #tpu.memory_space<vmem>>, %arg4: memref<32x1xf32, #tpu.memory_space<vmem>>, %arg5: memref<32x32xf32, #tpu.memory_space<vmem>>, %arg6: memref<32x1xf32, #tpu.memory_space<vmem>>, %arg7: memref<1x1xf32, #tpu.memory_space<smem>>, %arg8: memref<16x8xf32, #tpu.memory_space<vmem>>) attributes {dimension_semantics = [#tpu.dimension_semantics<arbitrary>], iteration_bounds = array<i64: 1>, scalar_prefetch = 0 : i64, scratch_operands = 1 : i64, tpu.core_type = #tpu.core_type<tc>, window_params = [{transform_indices = @transform_0, window_bounds = array<i64: 32, 8>}, {transform_indices = @transform_1, window_bounds = array<i64: 16, 8>}, {pipeline_mode = #tpu.pipeline_mode<synchronous>, transform_indices = @transform_2, window_bounds = array<i64: 32, 32>}, {pipeline_mode = #tpu.pipeline_mode<synchronous>, transform_indices = @transform_3, window_bounds = array<i64: 32, 1>}, {pipeline_mode = #tpu.pipeline_mode<synchronous>, transform_indices = @transform_4, window_bounds = array<i64: 32, 32>}, {pipeline_mode = #tpu.pipeline_mode<synchronous>, transform_indices = @transform_5, window_bounds = array<i64: 32, 1>}, {transform_indices = @transform_6, window_bounds = array<i64: 1, 1>}]} {
    %c0_i32 = arith.constant 0 : i32
    %0 = arith.cmpi eq, %arg0, %c0_i32 : i32
    %1 = arith.extui %0 : i1 to i32
    %c0_i32_0 = arith.constant 0 : i32
    %2 = arith.cmpi ne, %1, %c0_i32_0 : i32
    scf.if %2 {
      %cst_22 = arith.constant 0.000000e+00 : f32
      %c0_23 = arith.constant 0 : index
      %c0_24 = arith.constant 0 : index
      %33 = memref.load %arg7[%c0_23, %c0_24] : memref<1x1xf32, #tpu.memory_space<smem>>
      memref.store %cst_22, %arg7[%c0_23, %c0_24] : memref<1x1xf32, #tpu.memory_space<smem>>
      %cst_25 = arith.constant 0.000000e+00 : f32
      %34 = vector.broadcast %cst_25 : f32 to vector<16x8xf32>
      %c0_26 = arith.constant 0 : index
      %c0_27 = arith.constant 0 : index
      %35 = vector.load %arg8[%c0_26, %c0_27] : memref<16x8xf32, #tpu.memory_space<vmem>>, vector<16x8xf32>
      tpu.vector_store %arg8[%c0_26, %c0_27], %34 {strides = array<i32>} : memref<16x8xf32, #tpu.memory_space<vmem>>, vector<16x8xf32>,
    } else {
    }
    %c0 = arith.constant 0 : index
    %c0_1 = arith.constant 0 : index
    %3 = vector.load %arg1[%c0, %c0_1] : memref<32x8xf32, #tpu.memory_space<vmem>>, vector<32x8xf32>
    %c0_2 = arith.constant 0 : index
    %c0_3 = arith.constant 0 : index
    %4 = vector.load %arg3[%c0_2, %c0_3] : memref<32x32xf32, #tpu.memory_space<vmem>>, vector<32x32xf32>
    %cst = arith.constant dense<0.000000e+00> : vector<32x8xf32>
    %5 = tpu.matmul %4, %3, %cst {dimension_numbers = #tpu.dot_dimension_numbers<[1], [0], [0], [1], [0, 0, 1, 1], [], []>} : vector<32x32xf32>, vector<32x8xf32>, vector<32x8xf32> -> vector<32x8xf32>
    %c0_4 = arith.constant 0 : index
    %c0_5 = arith.constant 0 : index
    %6 = vector.load %arg4[%c0_4, %c0_5] : memref<32x1xf32, #tpu.memory_space<vmem>>, vector<32x1xf32>
    %7 = vector.broadcast %6 : vector<32x1xf32> to vector<32x8xf32>
    %8 = arith.addf %5, %7 : vector<32x8xf32>
    %cst_6 = arith.constant 0.000000e+00 : f32
    %9 = vector.broadcast %cst_6 : f32 to vector<32x8xf32>
    %10 = arith.maximumf %8, %9 : vector<32x8xf32>
    %c0_7 = arith.constant 0 : index
    %c0_8 = arith.constant 0 : index
    %11 = vector.load %arg5[%c0_7, %c0_8] : memref<32x32xf32, #tpu.memory_space<vmem>>, vector<32x32xf32>
    %cst_9 = arith.constant dense<0.000000e+00> : vector<32x8xf32>
    %12 = tpu.matmul %11, %10, %cst_9 {dimension_numbers = #tpu.dot_dimension_numbers<[1], [0], [0], [1], [0, 0, 1, 1], [], []>} : vector<32x32xf32>, vector<32x8xf32>, vector<32x8xf32> -> vector<32x8xf32>
    %c0_10 = arith.constant 0 : index
    %c0_11 = arith.constant 0 : index
    %13 = vector.load %arg6[%c0_10, %c0_11] : memref<32x1xf32, #tpu.memory_space<vmem>>, vector<32x1xf32>
    %14 = vector.broadcast %13 : vector<32x1xf32> to vector<32x8xf32>
    %15 = arith.addf %12, %14 : vector<32x8xf32>
    %16 = vector.extract_strided_slice %15 {offsets = [0, 0], sizes = [16, 8], strides = [1, 1]} : vector<32x8xf32> to vector<16x8xf32>
    %17 = vector.extract_strided_slice %15 {offsets = [16, 0], sizes = [16, 8], strides = [1, 1]} : vector<32x8xf32> to vector<16x8xf32>
    %c0_12 = arith.constant 0 : index
    %c0_13 = arith.constant 0 : index
    %18 = vector.load %arg2[%c0_12, %c0_13] : memref<16x8xf32, #tpu.memory_space<vmem>>, vector<16x8xf32>
    %19 = arith.subf %16, %18 : vector<16x8xf32>
    %cst_14 = arith.constant -5.000000e-01 : f32
    %20 = vector.broadcast %cst_14 : f32 to vector<16x8xf32>
    %21 = arith.mulf %20, %19 : vector<16x8xf32>
    %22 = arith.mulf %21, %19 : vector<16x8xf32>
    %cst_15 = arith.constant 0.000000e+00 : f32
    %23 = vector.broadcast %cst_15 : f32 to vector<16x8xf32>
    %24 = arith.subf %23, %17 : vector<16x8xf32>
    %25 = math.exp %24 : vector<16x8xf32>
    %26 = arith.mulf %22, %25 : vector<16x8xf32>
    %c0_16 = arith.constant 0 : index
    %c0_17 = arith.constant 0 : index
    %27 = vector.load %arg8[%c0_16, %c0_17] : memref<16x8xf32, #tpu.memory_space<vmem>>, vector<16x8xf32>
    %28 = arith.addf %27, %26 : vector<16x8xf32>
    %c0_18 = arith.constant 0 : index
    %c0_19 = arith.constant 0 : index
    %29 = vector.load %arg8[%c0_18, %c0_19] : memref<16x8xf32, #tpu.memory_space<vmem>>, vector<16x8xf32>
    tpu.vector_store %arg8[%c0_18, %c0_19], %28 {strides = array<i32>} : memref<16x8xf32, #tpu.memory_space<vmem>>, vector<16x8xf32>,
    %c0_i32_20 = arith.constant 0 : i32
    %30 = arith.cmpi eq, %arg0, %c0_i32_20 : i32
    %31 = arith.extui %30 : i1 to i32
    %c0_i32_21 = arith.constant 0 : i32
    %32 = arith.cmpi ne, %31, %c0_i32_21 : i32
    scf.if %32 {
      %c0_22 = arith.constant 0 : index
      %c0_23 = arith.constant 0 : index
      %33 = vector.load %arg8[%c0_22, %c0_23] : memref<16x8xf32, #tpu.memory_space<vmem>>, vector<16x8xf32>
      %34 = vector.shape_cast %33 : vector<16x8xf32> to vector<1x16x8xf32>
      %cst_24 = arith.constant dense<0.000000e+00> : vector<1xf32>
      %35 = vector.multi_reduction <add>, %34, %cst_24 [1, 2] : vector<1x16x8xf32> to vector<1xf32>
      %36 = vector.shape_cast %35 : vector<1xf32> to vector<1x1x1xf32>
      %37 = vector.extract %36[0, 0, 0] : f32 from vector<1x1x1xf32>
      %cst_25 = arith.constant 1.250000e-01 : f32
      %38 = arith.mulf %37, %cst_25 : f32
      %c0_26 = arith.constant 0 : index
      %c0_27 = arith.constant 0 : index
      %39 = memref.load %arg7[%c0_26, %c0_27] : memref<1x1xf32, #tpu.memory_space<smem>>
      memref.store %38, %arg7[%c0_26, %c0_27] : memref<1x1xf32, #tpu.memory_space<smem>>
    } else {
    }
    return
  }
  func.func @transform_0(%arg0: i32) -> (i32, i32) {
    %c0_i32 = arith.constant 0 : i32
    %c0_i32_0 = arith.constant 0 : i32
    return %c0_i32, %arg0 : i32, i32
  }
  func.func @transform_1(%arg0: i32) -> (i32, i32) {
    %c0_i32 = arith.constant 0 : i32
    %c0_i32_0 = arith.constant 0 : i32
    return %c0_i32, %arg0 : i32, i32
  }
  func.func @transform_2(%arg0: i32) -> (i32, i32) {
    %c0_i32 = arith.constant 0 : i32
    %c0_i32_0 = arith.constant 0 : i32
    %c0_i32_1 = arith.constant 0 : i32
    return %c0_i32, %c0_i32_0 : i32, i32
  }
  func.func @transform_3(%arg0: i32) -> (i32, i32) {
    %c0_i32 = arith.constant 0 : i32
    %c0_i32_0 = arith.constant 0 : i32
    %c0_i32_1 = arith.constant 0 : i32
    return %c0_i32, %c0_i32_0 : i32, i32
  }
  func.func @transform_4(%arg0: i32) -> (i32, i32) {
    %c0_i32 = arith.constant 0 : i32
    %c0_i32_0 = arith.constant 0 : i32
    %c0_i32_1 = arith.constant 0 : i32
    return %c0_i32, %c0_i32_0 : i32, i32
  }
  func.func @transform_5(%arg0: i32) -> (i32, i32) {
    %c0_i32 = arith.constant 0 : i32
    %c0_i32_0 = arith.constant 0 : i32
    %c0_i32_1 = arith.constant 0 : i32
    return %c0_i32, %c0_i32_0 : i32, i32
  }
  func.func @transform_6(%arg0: i32) -> (i32, i32) {
    %c0_i32 = arith.constant 0 : i32
    %c0_i32_0 = arith.constant 0 : i32
    %c0_i32_1 = arith.constant 0 : i32
    return %c0_i32, %c0_i32_0 : i32, i32
  }
}

</mosaic_0001>

<llo_original>
// kernel: tpu_custom_call.1
$region0: #{tpu_custom_call.1}
  #allocation0 [shape = 'u32[]', space=smem, size = 0x4, offset = 0x4, fixed_abs, tag = 'smem constant byte address 0x4 - core index']
  #allocation1 [shape = 'u32[72,128]{1,0:T(1,128)}', space=vmem, size = 0x9000, scoped, tag = 'internal scratch']
  #allocation2 [shape = 'f32[16,8]{1,0:T(8,128)}', space=vmem, size = 0x2000, scoped, tag = 'scratch operand']
  %s0 = inlined_call_operand.vmem [shape: f32[32,8], index: 0, kind: input, shape index: {}]
  %s1 = inlined_call_operand.vmem [shape: f32[16,8], index: 1, kind: input, shape index: {}]
  %s2 = inlined_call_operand.vmem [shape: f32[32,32], index: 2, kind: input, shape index: {}]
  %s3 = inlined_call_operand.vmem [shape: f32[32,1], index: 3, kind: input, shape index: {}]
  %s4 = inlined_call_operand.vmem [shape: f32[32,32], index: 4, kind: input, shape index: {}]
  %s5 = inlined_call_operand.vmem [shape: f32[32,1], index: 5, kind: input, shape index: {}]
  %s6 = inlined_call_operand.hbm [shape: f32[1,1], index: 6, kind: output, shape index: {}]
  %s7 = sld [smem:[#allocation0]]
  $region42: #{tpu_custom_call.1} parent=0
    _
  %s9 = ssub.s32 1, %s7
  %s10 = scalar_select 0, %s9, %s7
  $region1: #{tpu_custom_call.1} parent=0
    #allocation3 [shape = 'u8[512]{0}', space=smem, size = 0x200, scoped, tag = 'output window, operand 0, single buffered']
    #allocation4 [shape = 's32[1]{0}', space=sflag, size = 0x4, scoped, tag = 'scoped memory for tpu_custom_call.1']
    %11 = vsyncpa [#allocation4], 0
    // Predicated region
    $region2: #{tpu_custom_call.1} parent=1 // pred_check
      _
    $region3: #{tpu_custom_call.1} parent=1 // pred_check_branch
      %13 = sbr.rel (0) target = $region5
    $region4: #{tpu_custom_call.1} parent=1 // pred_region
      _
    $region5: #{tpu_custom_call.1} parent=1 // pred_fallthru
      _
    // Predicated region
    $region6: #{tpu_custom_call.1} parent=1 // pred_check
      _
    $region7: #{tpu_custom_call.1} parent=1 // pred_check_branch
      %15 = sbr.rel (0) target = $region9
    $region8: #{tpu_custom_call.1} parent=1 // pred_region
      _
    $region9: #{tpu_custom_call.1} parent=1 // pred_fallthru
      _
    // Predicated region
    $region10: #{tpu_custom_call.1} parent=1 // pred_check
      _
    $region11: #{tpu_custom_call.1} parent=1 // pred_check_branch
      %17 = sbr.rel (0) target = $region13
    $region12: #{tpu_custom_call.1} parent=1 // pred_region
      _
    $region13: #{tpu_custom_call.1} parent=1 // pred_fallthru
      _
    // Predicated region
    $region14: #{tpu_custom_call.1} parent=1 // pred_check
      _
    $region15: #{tpu_custom_call.1} parent=1 // pred_check_branch
      %19 = sbr.rel (0) target = $region17
    $region16: #{tpu_custom_call.1} parent=1 // pred_region
      _
    $region17: #{tpu_custom_call.1} parent=1 // pred_fallthru
      _
    // Predicated region
    $region18: #{tpu_custom_call.1} parent=1 // pred_check
      _
    $region19: #{tpu_custom_call.1} parent=1 // pred_check_branch
      %21 = sbr.rel (0) target = $region21
    $region20: #{tpu_custom_call.1} parent=1 // pred_region
      _
    $region21: #{tpu_custom_call.1} parent=1 // pred_fallthru
      _
    // Predicated region
    $region22: #{tpu_custom_call.1} parent=1 // pred_check
      _
    $region23: #{tpu_custom_call.1} parent=1 // pred_check_branch
      %23 = sbr.rel (0) target = $region25
    $region24: #{tpu_custom_call.1} parent=1 // pred_region
      _
    $region25: #{tpu_custom_call.1} parent=1 // pred_fallthru
      _
    %p24 = scmp.eq.s32.totalorder 0, 0
    // Predicated region
    $region26: #{tpu_custom_call.1} parent=1 // pred_check
      %p25 = pneg %p24
    $region27: #{tpu_custom_call.1} parent=1 // pred_check_branch
      %27 = sbr.rel (%p25) target = $region29
    $region28: #{tpu_custom_call.1} parent=1 // pred_region
      %s28 = scalar_lea.smem [#allocation3], 0
      %29 = sst [smem:[%s28]] 0.0
      %vm30 = vcmask 64512
      %31 = vst.msk [vmem:[#allocation2] sm:$0xff] %vm30, 0.0
      %32 = vst.msk [vmem:[#allocation2 + $0x8] sm:$0xff] %vm30, 0.0
    $region29: #{tpu_custom_call.1} parent=1 // pred_fallthru
      _
    %v33 = vld [vmem:[%s0] sm:$0xff]
    %v34 = vld [vmem:[%s0 + $0x8] sm:$0xff]
    %v35 = vld [vmem:[%s0 + $0x10] sm:$0xff]
    %v36 = vld [vmem:[%s0 + $0x18] sm:$0xff]
    %v37 = vld [vmem:[%s2] sm:$0xff]
    %v38 = vld [vmem:[%s2 + $0x8] sm:$0xff]
    %v39 = vld [vmem:[%s2 + $0x10] sm:$0xff]
    %v40 = vld [vmem:[%s2 + $0x18] sm:$0xff]
    %v41 = vld [vmem:[%s3] sm:$0xff]
    %v42 = vld [vmem:[%s3 + $0x8] sm:$0xff]
    %v43 = vld [vmem:[%s3 + $0x10] sm:$0xff]
    %v44 = vld [vmem:[%s3 + $0x18] sm:$0xff]
    %46 = vset.pattern.permute.xlu0 0
    %47 = vperm.xlu0 %46, %v41
    %v48 = vpop.permute.xlu0 %47
    %51 = vset.pattern.permute.xlu0 0
    %52 = vperm.xlu0 %51, %v42
    %v53 = vpop.permute.xlu0 %52
    %56 = vset.pattern.permute.xlu0 0
    %57 = vperm.xlu0 %56, %v43
    %v58 = vpop.permute.xlu0 %57
    %61 = vset.pattern.permute.xlu0 0
    %62 = vperm.xlu0 %61, %v44
    %v63 = vpop.permute.xlu0 %62
    %vm65 = vcmask 261120
    %v67 = vsel %vm65, %v37, 0
    %v70 = vsel %vm65, %v38, 0
    %v73 = vsel %vm65, %v39, 0
    %v76 = vsel %vm65, %v40, 0
    %78 = vmatpush.msra.mxu0 0.0
    %79 = vmatpush.msra.mxu0 0.0
    %80 = vmatpush.msra.mxu0 0.0
    %81 = vmatpush.msra.mxu0 0.0
    %82 = vmatpush.msra.mxu0 0.0
    %83 = vmatpush.msra.mxu0 0.0
    %84 = vmatpush.msra.mxu0 0.0
    %85 = vmatpush.msra.mxu0 0.0
    %86 = vmatpush.msra.mxu0 0.0
    %87 = vmatpush.msra.mxu0 0.0
    %88 = vmatpush.msra.mxu0 0.0
    %89 = vmatpush.msra.mxu0 0.0
    %90 = vmatpush.msra.mxu0 %v36
    %91 = vmatpush.msra.mxu0 %v35
    %92 = vmatpush.msra.mxu0 %v34
    %93 = vmatpush.msra.mxu0 %v33
    %94 = vmatmul.f32.gmra.mxu0 %v67
    %v95 = vpop.f32.mrf.mxu0
    %v96 = vadd.f32 %v48, %v95
    %97 = vmatmul.f32.gmra.mxu0 %v70
    %v98 = vpop.f32.mrf.mxu0
    %v99 = vadd.f32 %v53, %v98
    %100 = vmatmul.f32.gmra.mxu0 %v73
    %v101 = vpop.f32.mrf.mxu0
    %v102 = vadd.f32 %v58, %v101
    %103 = vmatmul.f32.gmra.mxu0 %v76
    %v104 = vpop.f32.mrf.mxu0
    %v105 = vadd.f32 %v63, %v104
    %106 = vdwg.mxu0
    %v107 = vmax.f32 %v96, 0.0
    %v108 = vmax.f32 %v99, 0.0
    %v109 = vmax.f32 %v102, 0.0
    %v110 = vmax.f32 %v105, 0.0
    %v111 = vld [vmem:[%s4] sm:$0xff]
    %v112 = vld [vmem:[%s4 + $0x8] sm:$0xff]
    %v113 = vld [vmem:[%s4 + $0x10] sm:$0xff]
    %v114 = vld [vmem:[%s4 + $0x18] sm:$0xff]
    %v115 = vld [vmem:[%s5] sm:$0xff]
    %v116 = vld [vmem:[%s5 + $0x8] sm:$0xff]
    %v117 = vld [vmem:[%s5 + $0x10] sm:$0xff]
    %v118 = vld [vmem:[%s5 + $0x18] sm:$0xff]
    %120 = vset.pattern.permute.xlu0 0
    %121 = vperm.xlu0 %120, %v115
    %v122 = vpop.permute.xlu0 %121
    %125 = vset.pattern.permute.xlu0 0
    %126 = vperm.xlu0 %125, %v116
    %v127 = vpop.permute.xlu0 %126
    %130 = vset.pattern.permute.xlu0 0
    %131 = vperm.xlu0 %130, %v117
    %v132 = vpop.permute.xlu0 %131
    %135 = vset.pattern.permute.xlu0 0
    %136 = vperm.xlu0 %135, %v118
    %v137 = vpop.permute.xlu0 %136
    %v140 = vsel %vm65, %v111, 0
    %v143 = vsel %vm65, %v112, 0
    %v146 = vsel %vm65, %v113, 0
    %v149 = vsel %vm65, %v114, 0
    %151 = vmatpush.msra.mxu0 0.0
    %152 = vmatpush.msra.mxu0 0.0
    %153 = vmatpush.msra.mxu0 0.0
    %154 = vmatpush.msra.mxu0 0.0
    %155 = vmatpush.msra.mxu0 0.0
    %156 = vmatpush.msra.mxu0 0.0
    %157 = vmatpush.msra.mxu0 0.0
    %158 = vmatpush.msra.mxu0 0.0
    %159 = vmatpush.msra.mxu0 0.0
    %160 = vmatpush.msra.mxu0 0.0
    %161 = vmatpush.msra.mxu0 0.0
    %162 = vmatpush.msra.mxu0 0.0
    %163 = vmatpush.msra.mxu0 %v110
    %164 = vmatpush.msra.mxu0 %v109
    %165 = vmatpush.msra.mxu0 %v108
    %166 = vmatpush.msra.mxu0 %v107
    %167 = vmatmul.f32.gmra.mxu0 %v140
    %v168 = vpop.f32.mrf.mxu0
    %v169 = vadd.f32 %v122, %v168
    %170 = vmatmul.f32.gmra.mxu0 %v143
    %v171 = vpop.f32.mrf.mxu0
    %v172 = vadd.f32 %v127, %v171
    %173 = vmatmul.f32.gmra.mxu0 %v146
    %v174 = vpop.f32.mrf.mxu0
    %v175 = vadd.f32 %v132, %v174
    %176 = vmatmul.f32.gmra.mxu0 %v149
    %v177 = vpop.f32.mrf.mxu0
    %v178 = vadd.f32 %v137, %v177
    %179 = vdwg.mxu0
    %v180 = vld [vmem:[%s1] sm:$0xff]
    %v181 = vld [vmem:[%s1 + $0x8] sm:$0xff]
    %v182 = vsub.f32 %v169, %v180
    %v183 = vsub.f32 %v172, %v181
    %v184 = vmul.f32 %v182, -0.5
    %v185 = vmul.f32 %v183, -0.5
    %v186 = vmul.f32 %v184, %v182
    %v187 = vmul.f32 %v185, %v183
    %v188 = vsub.f32 0.0, %v175
    %v189 = vsub.f32 0.0, %v178
    %v190 = vmul.f32 %v188, 1.442695
    %v191 = vpow.pop %v190
    %v192 = vmul.f32 %v189, 1.442695
    %v193 = vpow.pop %v192
    %v194 = vmul.f32 %v186, %v191
    %v195 = vmul.f32 %v187, %v193
    %v196 = vld [vmem:[#allocation2] sm:$0xff]
    %v197 = vld [vmem:[#allocation2 + $0x8] sm:$0xff]
    %v198 = vadd.f32 %v196, %v194
    %v199 = vadd.f32 %v197, %v195
    %vm200 = vcmask 64512
    %201 = vst.msk [vmem:[#allocation2] sm:$0xff] %vm200, %v198
    %202 = vst.msk [vmem:[#allocation2 + $0x8] sm:$0xff] %vm200, %v199
    // Predicated region
    $region30: #{tpu_custom_call.1} parent=1 // pred_check
      %p203 = pneg %p24
    $region31: #{tpu_custom_call.1} parent=1 // pred_check_branch
      %205 = sbr.rel (%p203) target = $region33
    $region32: #{tpu_custom_call.1} parent=1 // pred_region
      %v206 = vld [vmem:[#allocation2] sm:$0xff]
      %v207 = vld [vmem:[#allocation2 + $0x8] sm:$0xff]
      %v208 = vsel %vm200, %v206, 0.0
      %v209 = vsel %vm200, %v207, 0.0
      %v210 = vadd.f32 %v208, %v209
      %211 = vadd.xlane.f32.xlu0 %v210
      %v212 = vpop.xlane.xlu0 %211
      %v213 = vrot.slane %v212, 4
      %v214 = vadd.f32 %v212, %v213
      %v215 = vrot.slane %v214, 2
      %v216 = vadd.f32 %v214, %v215
      %v217 = vrot.slane %v216, 1
      %v218 = vadd.f32 %v216, %v217
      %s219 = vtos %v218
      %s220 = smul.f32 %s219, 0.125
      %s221 = scalar_lea.smem [#allocation3], 0
      %222 = sst [smem:[%s221]] %s220
    $region33: #{tpu_custom_call.1} parent=1 // pred_fallthru
      _
    // Predicated region
    $region34: #{tpu_custom_call.1} parent=1 // pred_check
      _
    $region35: #{tpu_custom_call.1} parent=1 // pred_check_branch
      %224 = sbr.rel (0) target = $region37
    $region36: #{tpu_custom_call.1} parent=1 // pred_region
      %226 = vsyncadd [#allocation4], 0
      %s228 = sshll.u32 %s6, 4
      %s229 = int_to_ptr.hbm [resolvable:$true] %s228
      %231 = dma.smem_to_hbm [#allocation3], 16, %s229, [#allocation4]
    $region37: #{tpu_custom_call.1} parent=1 // pred_fallthru
      _
    // Predicated region
    $region38: #{tpu_custom_call.1} parent=1 // pred_check
      _
    $region39: #{tpu_custom_call.1} parent=1 // pred_check_branch
      %233 = sbr.rel (0) target = $region41
    $region40: #{tpu_custom_call.1} parent=1 // pred_region
      %235 = dma.done [#allocation4], 16
    $region41: #{tpu_custom_call.1} parent=1 // pred_fallthru
      _
    %236 = sfence
    %237 = vsyncpa [#allocation4], 1

</llo_original>
